<compile_context>
chip_gen: v5e
topology: v5e:2x2
jax: 0.10.0
libtpu: 0.0.40
codegen_flags: <defaults>
</compile_context>

<pallas_src>
import functools

import jax
import jax.numpy as jnp
from jax.experimental import pallas as pl
from jax.experimental.pallas import tpu as pltpu


def _round_up(x, m):
    return (x + m - 1) // m * m


# ---------------------------------------------------------------------------
# Feature probe: is single-buffering via pipeline_mode=pl.Buffered(1) usable?
# (Cheap one-off compile; if not available we silently fall back to the
#  default double-buffered pipeline.)
# ---------------------------------------------------------------------------
@functools.lru_cache(maxsize=None)
def _single_buffer_supported():
    if not hasattr(pl, "Buffered"):
        return False

    def _copy(x_ref, o_ref):
        o_ref[...] = x_ref[...]

    try:
        fn = pl.pallas_call(
            _copy,
            out_shape=jax.ShapeDtypeStruct((16, 128), jnp.float32),
            grid=(2,),
            in_specs=[pl.BlockSpec((8, 128), lambda i: (0, 0),
                                   pipeline_mode=pl.Buffered(buffer_count=1))],
            out_specs=pl.BlockSpec((8, 128), lambda i: (i, 0)),
        )
        jax.jit(fn).lower(jnp.zeros((8, 128), jnp.float32)).compile()
        return True
    except Exception:
        return False


def _make_compiler_params(dimension_semantics, vmem_limit_bytes,
                          allow_input_fusion):
    kwargs = dict(dimension_semantics=dimension_semantics,
                  vmem_limit_bytes=vmem_limit_bytes)
    if allow_input_fusion is not None:
        try:
            return pltpu.CompilerParams(allow_input_fusion=allow_input_fusion,
                                        **kwargs)
        except TypeError:
            pass
    return pltpu.CompilerParams(**kwargs)


# ---------------------------------------------------------------------------
# Pallas kernel: one (tm, K) x (K, tn) MXU matmul + bias add  ==  nn.Linear
# ---------------------------------------------------------------------------
def _linear_kernel(x_ref, w_ref, b_ref, o_ref):
    # x_ref: (tm, Kp)   w_ref: (Kp, tn)   b_ref: (1, tn)   o_ref: (tm, tn)
    acc = jnp.dot(x_ref[...], w_ref[...], preferred_element_type=jnp.float32)
    o_ref[...] = (acc + b_ref[...].astype(jnp.float32)).astype(o_ref.dtype)


def pallas_linear(x2d, weight, bias, *, compute_dtype=None):
    """x2d: (M, K), weight: (K, N), bias: (N,) -> (M, N) == x2d @ weight + bias.

    compute_dtype: optionally cast activations/weight (e.g. jnp.bfloat16 on
    v5e) at the call boundary; accumulation and bias add stay in float32.
    """
    M, K = x2d.shape
    Kw, N = weight.shape
    assert K == Kw
    out_dtype = x2d.dtype

    if compute_dtype is not None:
        x2d = x2d.astype(compute_dtype)
        weight = weight.astype(compute_dtype)

    # Lane-dense padding: K and N up to multiples of 128 (vreg lane width).
    Kp = max(_round_up(K, 128), 128)
    Np = max(_round_up(N, 128), 128)

    # Token tile: fill the MXU row dimension; pad M so tm always divides it.
    tm = 256 if M >= 256 else _round_up(M, 8)
    Mp = _round_up(M, tm)

    # N tile: full width when modest, else a lane-dense 512/256/128 divisor
    # (keeps the resident weight slab at K x tn -- important on v7x's 64 MiB).
    if Np <= 512:
        tn = Np
    elif Np % 512 == 0:
        tn = 512
    elif Np % 256 == 0:
        tn = 256
    else:
        tn = 128

    if (Mp, Kp) != (M, K):
        x2d = jnp.pad(x2d, ((0, Mp - M), (0, Kp - K)))
    if (Kp, Np) != (K, N):
        weight = jnp.pad(weight, ((0, Kp - K), (0, Np - N)))
    bias2d = bias.reshape(1, N)
    if Np != N:
        bias2d = jnp.pad(bias2d, ((0, 0), (0, Np - N)))

    n_m = Mp // tm
    n_n = Np // tn

    # Weight/bias blocks never change when there is a single N tile ->
    # single-buffer them (avoids keeping 2x the full weight in VMEM).
    single_buf = (n_n == 1) and _single_buffer_supported()
    w_bufs = 1 if single_buf else 2

    def _const_spec(shape, index_map):
        if single_buf:
            return pl.BlockSpec(shape, index_map,
                                pipeline_mode=pl.Buffered(buffer_count=1))
        return pl.BlockSpec(shape, index_map)

    # grid = (N tiles, M tiles): the weight tile is held across the whole
    # inner sweep over token tiles; only activations/outputs stream.
    in_specs = [
        pl.BlockSpec((tm, Kp), lambda j, i: (i, 0)),       # activations
        _const_spec((Kp, tn), lambda j, i: (0, j)),        # weight slab
        _const_spec((1, tn), lambda j, i: (0, j)),         # bias
    ]
    out_spec = pl.BlockSpec((tm, tn), lambda j, i: (i, j))

    in_bytes = jnp.dtype(x2d.dtype).itemsize
    out_bytes = jnp.dtype(out_dtype).itemsize
    # Explicit VMEM budget: double-buffered activations/outputs, weight per
    # w_bufs, bias padded to 8 sublanes; +4 MiB headroom, floor at the 32 MiB
    # default so we never shrink the compiler's budget.
    vmem_needed = (2 * tm * Kp * in_bytes
                   + w_bufs * Kp * tn * in_bytes
                   + w_bufs * 8 * tn * 4
                   + 2 * tm * tn * out_bytes)
    vmem_limit = int(max(vmem_needed + (4 << 20), 32 << 20))

    compiler_params = _make_compiler_params(
        dimension_semantics=("parallel", "parallel"),
        vmem_limit_bytes=vmem_limit,
        allow_input_fusion=[True, False, False],  # let XLA fuse the rearrange
    )

    cost = pl.CostEstimate(
        flops=int(2 * Mp * Kp * Np),
        transcendentals=0,
        bytes_accessed=int(Mp * Kp * in_bytes + Kp * Np * in_bytes
                           + Np * 4 + Mp * Np * out_bytes),
    )

    out = pl.pallas_call(
        _linear_kernel,
        out_shape=jax.ShapeDtypeStruct((Mp, Np), out_dtype),
        grid_spec=pltpu.PrefetchScalarGridSpec(
            num_scalar_prefetch=0,
            grid=(n_n, n_m),
            in_specs=in_specs,
            out_specs=out_spec,
        ),
        compiler_params=compiler_params,
        cost_estimate=cost,
    )(x2d, weight, bias2d)

    if (Mp, Np) != (M, N):
        out = out[:M, :N]
    return out


# ---------------------------------------------------------------------------
# Module-equivalent wrapper
# ---------------------------------------------------------------------------
class RasterScan1DGroupedEmbedding:
    def __init__(self, img_size, pre_patch_size, group_patch_size,
                 in_channels, embed_dim, *, key):
        assert img_size % pre_patch_size == 0, \
            "Image must be divisible by pre_patch_size"
        self.img_size = img_size
        self.pre_patch_size = pre_patch_size
        self.group_patch_size = group_patch_size
        self.in_channels = in_channels
        self.embed_dim = embed_dim
        self.grid_size = img_size // pre_patch_size
        self.n_pre_patches = self.grid_size * self.grid_size
        self.n_final_patches = self.n_pre_patches // group_patch_size
        self.pre_patch_dim = in_channels * pre_patch_size * pre_patch_size
        self.input_dim = self.pre_patch_dim * group_patch_size

        # Deterministic parameter init (mimics nn.Linear's uniform(-b, b)).
        kw, kb = jax.random.split(key)
        bound = 1.0 / jnp.sqrt(self.input_dim)
        # weight stored as (input_dim, embed_dim) = transposed torch layout
        self.weight = jax.random.uniform(
            kw, (self.input_dim, embed_dim), jnp.float32, -bound, bound)
        self.bias = jax.random.uniform(
            kb, (embed_dim,), jnp.float32, -bound, bound)

    def _rearrange(self, x):
        # x: (B, C, H, W) NCHW
        B, C, H, W = x.shape
        p = self.pre_patch_size
        h, w = H // p, W // p
        # 'b c (h p1) (w p2) -> b (h w) (p1 p2 c)'
        x = x.reshape(B, C, h, p, w, p)
        x = jnp.transpose(x, (0, 2, 4, 3, 5, 1))            # (B, h, w, p1, p2, C)
        x = x.reshape(B, h * w, p * p * C)                  # (B, n_pre, pre_dim)
        # 'b (n g) d -> b n (g d)'
        g = self.group_patch_size
        x = x.reshape(B, self.n_final_patches, g * self.pre_patch_dim)
        return x

    def __call__(self, x, *, compute_dtype=None):
        # On v5e, pass compute_dtype=jnp.bfloat16 (f32 accumulation is kept).
        B = x.shape[0]
        x = self._rearrange(x)                               # (B, n_final, input_dim)
        x2d = x.reshape(B * self.n_final_patches, self.input_dim)
        out2d = pallas_linear(x2d, self.weight, self.bias,
                              compute_dtype=compute_dtype)
        return out2d.reshape(B, self.n_final_patches, self.embed_dim)

    # Pure-JAX reference for correctness checking.
    def reference(self, x):
        x = self._rearrange(x)
        return jnp.einsum("bnd,de->bne", x, self.weight) + self.bias


# ---------------------------------------------------------------------------
if __name__ == "__main__":
    key = jax.random.PRNGKey(0)
    k_in, k_params = jax.random.split(key)

    # Small, consistent config:
    B, C = 2, 4
    img_size = 16
    pre_patch_size = 2
    group_patch_size = 4
    embed_dim = 32
    # => grid_size=8, n_pre=64, n_final=16, pre_patch_dim=16, input_dim=64

    module = RasterScan1DGroupedEmbedding(
        img_size, pre_patch_size, group_patch_size, C, embed_dim, key=k_params)

    x = jax.random.normal(k_in, (B, C, img_size, img_size), jnp.float32)

    out = jax.jit(module.__call__)(x)
    out = jax.block_until_ready(out)

    ref = module.reference(x)
    assert out.shape == (B, module.n_final_patches, embed_dim), out.shape
    assert jnp.allclose(out, ref, atol=1e-5, rtol=1e-5), \
        float(jnp.max(jnp.abs(out - ref)))

    print("KERNEL_OK")
</pallas_src>

<mosaic_0001>
module attributes {stable_mosaic.version = 11 : i64} {
  func.func @_linear_kernel(%arg0: i32, %arg1: i32, %arg2: memref<32x128xf32, #tpu.memory_space<vmem>>, %arg3: memref<128x128xf32, #tpu.memory_space<vmem>>, %arg4: memref<1x128xf32, #tpu.memory_space<vmem>>, %arg5: memref<32x128xf32, #tpu.memory_space<vmem>>) attributes {dimension_semantics = [#tpu.dimension_semantics<parallel>, #tpu.dimension_semantics<parallel>], iteration_bounds = array<i64: 1, 1>, scalar_prefetch = 0 : i64, scratch_operands = 0 : i64, tpu.core_type = #tpu.core_type<tc>, window_params = [{transform_indices = @transform_0, window_bounds = array<i64: 32, 128>}, {transform_indices = @transform_1, window_bounds = array<i64: 128, 128>}, {transform_indices = @transform_2, window_bounds = array<i64: 1, 128>}, {transform_indices = @transform_3, window_bounds = array<i64: 32, 128>}]} {
    %c0 = arith.constant 0 : index
    %c0_0 = arith.constant 0 : index
    %0 = vector.load %arg2[%c0, %c0_0] : memref<32x128xf32, #tpu.memory_space<vmem>>, vector<32x128xf32>
    %c0_1 = arith.constant 0 : index
    %c0_2 = arith.constant 0 : index
    %1 = vector.load %arg3[%c0_1, %c0_2] : memref<128x128xf32, #tpu.memory_space<vmem>>, vector<128x128xf32>
    %cst = arith.constant dense<0.000000e+00> : vector<32x128xf32>
    %2 = tpu.matmul %0, %1, %cst {dimension_numbers = #tpu.dot_dimension_numbers<[1], [0], [0], [1], [0, 0, 1, 1], [], []>} : vector<32x128xf32>, vector<128x128xf32>, vector<32x128xf32> -> vector<32x128xf32>
    %c0_3 = arith.constant 0 : index
    %c0_4 = arith.constant 0 : index
    %3 = vector.load %arg4[%c0_3, %c0_4] : memref<1x128xf32, #tpu.memory_space<vmem>>, vector<1x128xf32>
    %4 = vector.broadcast %3 : vector<1x128xf32> to vector<32x128xf32>
    %5 = arith.addf %2, %4 : vector<32x128xf32>
    %c0_5 = arith.constant 0 : index
    %c0_6 = arith.constant 0 : index
    %6 = vector.load %arg5[%c0_5, %c0_6] : memref<32x128xf32, #tpu.memory_space<vmem>>, vector<32x128xf32>
    tpu.vector_store %arg5[%c0_5, %c0_6], %5 {strides = array<i32>} : memref<32x128xf32, #tpu.memory_space<vmem>>, vector<32x128xf32>,
    return
  }
  func.func @transform_0(%arg0: i32, %arg1: i32) -> (i32, i32) {
    %c0_i32 = arith.constant 0 : i32
    %c0_i32_0 = arith.constant 0 : i32
    return %arg1, %c0_i32 : i32, i32
  }
  func.func @transform_1(%arg0: i32, %arg1: i32) -> (i32, i32) {
    %c0_i32 = arith.constant 0 : i32
    %c0_i32_0 = arith.constant 0 : i32
    return %c0_i32, %arg0 : i32, i32
  }
  func.func @transform_2(%arg0: i32, %arg1: i32) -> (i32, i32) {
    %c0_i32 = arith.constant 0 : i32
    %c0_i32_0 = arith.constant 0 : i32
    return %c0_i32, %arg0 : i32, i32
  }
  func.func @transform_3(%arg0: i32, %arg1: i32) -> (i32, i32) {
    %c0_i32 = arith.constant 0 : i32
    return %arg1, %arg0 : i32, i32
  }
}

</mosaic_0001>

<llo_original>
// kernel: a_call__.2
$region0: #{a_call__.2}
  #allocation0 [shape = 'u32[]', space=smem, size = 0x4, offset = 0x4, fixed_abs, tag = 'smem constant byte address 0x4 - core index']
  #allocation1 [shape = 'u32[72,128]{1,0:T(1,128)}', space=vmem, size = 0x9000, scoped, tag = 'internal scratch']
  #allocation2 [shape = 'u32[2048]{0}', space=vmem, size = 0x2000, scoped, tag = 'scoped memory for a_call__.2']
  #allocation3 [shape = 'u32[2048]{0}', space=vmem, size = 0x2000, scoped, tag = 'scoped memory for a_call__.2']
  #allocation4 [shape = 'u32[2048]{0}', space=vmem, size = 0x2000, scoped, tag = 'scoped memory for a_call__.2']
  #allocation5 [shape = 'u32[2048]{0}', space=vmem, size = 0x2000, scoped, tag = 'scoped memory for a_call__.2']
  #allocation6 [shape = 'u32[2048]{0}', space=vmem, size = 0x2000, scoped, tag = 'scoped memory for a_call__.2']
  %s0 = inlined_call_operand.vmem [shape: f32[128,128], index: 0, kind: input, shape index: {}]
  %s1 = inlined_call_operand.vmem [shape: f32[1,128], index: 1, kind: input, shape index: {}]
  %s2 = inlined_call_operand.vmem [shape: f32[32,64], index: 2, kind: input, shape index: {}]
  %s3 = inlined_call_operand.<no memory space> [shape: f32[], index: 3, kind: input, shape index: {}]
  %s4 = inlined_call_operand.hbm [shape: f32[32,128], index: 4, kind: output, shape index: {}]
  %s5 = sld [smem:[#allocation0]]
  $region22: #{a_call__.2} parent=0
    _
  %s7 = ssub.s32 1, %s5
  %s8 = scalar_select 0, %s7, %s5
  %v9 = vstv %s3
  $region1: #{a_call__.2} parent=0
    #allocation7 [shape = 'u8[16384]{0}', space=vmem, size = 0x4000, scoped, tag = 'output window, operand 0, single buffered']
    #allocation8 [shape = 's32[1]{0}', space=sflag, size = 0x4, scoped, tag = 'scoped memory for a_call__.2']
    #allocation9 [shape = 'u8[16384]{0}', space=vmem, size = 0x4000, dematerialized = true, scoped, tag = 'FusionAdapter Buffer %fusion.1 = f32[32,128]{1,0:T(8,128)} fusion(%param_2.1, %param_3), kind=kLoop, calls=%fused_computation.1.clone, metadata={op_name="jit(__call__)/jit(_pad)/pad" stack_frame_id=11}']
    %10 = vsyncpa [#allocation8], 0
    // Predicated region
    $region2: #{a_call__.2} parent=1 // pred_check
      _
    $region3: #{a_call__.2} parent=1 // pred_check_branch
      %12 = sbr.rel (0) target = $region5
    $region4: #{a_call__.2} parent=1 // pred_region
      _
    $region5: #{a_call__.2} parent=1 // pred_fallthru
      _
    // Predicated region
    $region6: #{a_call__.2} parent=1 // pred_check
      _
    $region7: #{a_call__.2} parent=1 // pred_check_branch
      %14 = sbr.rel (0) target = $region9
    $region8: #{a_call__.2} parent=1 // pred_region
      _
    $region9: #{a_call__.2} parent=1 // pred_fallthru
      _
    // Predicated region
    $region10: #{a_call__.2} parent=1 // pred_check
      _
    $region11: #{a_call__.2} parent=1 // pred_check_branch
      %16 = sbr.rel (0) target = $region13
    $region12: #{a_call__.2} parent=1 // pred_region
      _
    $region13: #{a_call__.2} parent=1 // pred_fallthru
      _
    %v17 = vld [vmem:[%s2] sm:$0xff]
    %v18 = vlaneseq
    %v19 = vand.u32 %v18, 127
    %vm21 = vcmp.lt.s32.totalorder %v19, 64
    %v22 = vsel %vm21, %v17, %v9
    %s24 = ssub.s32 256, 1
    %25 = vst [vmem:[#allocation9] sm:%s24] %v22
    %s26 = scalar_lea.vmem %s2, 8
    %v27 = vld [vmem:[%s26] sm:$0xff]
    %v28 = vlaneseq
    %v29 = vand.u32 %v28, 127
    %vm31 = vcmp.lt.s32.totalorder %v29, 64
    %v32 = vsel %vm31, %v27, %v9
    %s33 = scalar_lea.vmem [#allocation9], 8
    %s35 = ssub.s32 256, 1
    %36 = vst [vmem:[%s33] sm:%s35] %v32
    %s37 = scalar_lea.vmem %s2, 16
    %v38 = vld [vmem:[%s37] sm:$0xff]
    %v39 = vlaneseq
    %v40 = vand.u32 %v39, 127
    %vm42 = vcmp.lt.s32.totalorder %v40, 64
    %v43 = vsel %vm42, %v38, %v9
    %s44 = scalar_lea.vmem [#allocation9], 16
    %s46 = ssub.s32 256, 1
    %47 = vst [vmem:[%s44] sm:%s46] %v43
    %s48 = scalar_lea.vmem %s2, 24
    %v49 = vld [vmem:[%s48] sm:$0xff]
    %v50 = vlaneseq
    %v51 = vand.u32 %v50, 127
    %vm53 = vcmp.lt.s32.totalorder %v51, 64
    %v54 = vsel %vm53, %v49, %v9
    %s55 = scalar_lea.vmem [#allocation9], 24
    %s57 = ssub.s32 256, 1
    %58 = vst [vmem:[%s55] sm:%s57] %v54
    %v59 = vld [vmem:[#allocation9] sm:$0xff]
    %v60 = vld [vmem:[#allocation9 + $0x8] sm:$0xff]
    %v61 = vld [vmem:[#allocation9 + $0x10] sm:$0xff]
    %v62 = vld [vmem:[#allocation9 + $0x18] sm:$0xff]
    %v63 = vld [vmem:[%s0] sm:$0xff]
    %v64 = vld [vmem:[%s0 + $0x8] sm:$0xff]
    %v65 = vld [vmem:[%s0 + $0x10] sm:$0xff]
    %v66 = vld [vmem:[%s0 + $0x18] sm:$0xff]
    %v67 = vld [vmem:[%s0 + $0x20] sm:$0xff]
    %v68 = vld [vmem:[%s0 + $0x28] sm:$0xff]
    %v69 = vld [vmem:[%s0 + $0x30] sm:$0xff]
    %v70 = vld [vmem:[%s0 + $0x38] sm:$0xff]
    %v71 = vld [vmem:[%s0 + $0x40] sm:$0xff]
    %v72 = vld [vmem:[%s0 + $0x48] sm:$0xff]
    %v73 = vld [vmem:[%s0 + $0x50] sm:$0xff]
    %v74 = vld [vmem:[%s0 + $0x58] sm:$0xff]
    %v75 = vld [vmem:[%s0 + $0x60] sm:$0xff]
    %v76 = vld [vmem:[%s0 + $0x68] sm:$0xff]
    %v77 = vld [vmem:[%s0 + $0x70] sm:$0xff]
    %v78 = vld [vmem:[%s0 + $0x78] sm:$0xff]
    %v79 = vld [vmem:[%s1] sm:$0x1]
    %v81 = vperm.slane %v79, 0
    %83 = vmatpush.msra.mxu0 %v78
    %84 = vmatpush.msra.mxu0 %v77
    %85 = vmatpush.msra.mxu0 %v76
    %86 = vmatpush.msra.mxu0 %v75
    %87 = vmatpush.msra.mxu0 %v74
    %88 = vmatpush.msra.mxu0 %v73
    %89 = vmatpush.msra.mxu0 %v72
    %90 = vmatpush.msra.mxu0 %v71
    %91 = vmatpush.msra.mxu0 %v70
    %92 = vmatpush.msra.mxu0 %v69
    %93 = vmatpush.msra.mxu0 %v68
    %94 = vmatpush.msra.mxu0 %v67
    %95 = vmatpush.msra.mxu0 %v66
    %96 = vmatpush.msra.mxu0 %v65
    %97 = vmatpush.msra.mxu0 %v64
    %98 = vmatpush.msra.mxu0 %v63
    %99 = vmatmul.f32.gmra.mxu0 %v59
    %v100 = vpop.f32.mrf.mxu0
    %v101 = vadd.f32 %v81, %v100
    %102 = vmatmul.f32.gmra.mxu0 %v60
    %v103 = vpop.f32.mrf.mxu0
    %v104 = vadd.f32 %v81, %v103
    %105 = vmatmul.f32.gmra.mxu0 %v61
    %v106 = vpop.f32.mrf.mxu0
    %v107 = vadd.f32 %v81, %v106
    %108 = vmatmul.f32.gmra.mxu0 %v62
    %v109 = vpop.f32.mrf.mxu0
    %v110 = vadd.f32 %v81, %v109
    %111 = vdwg.mxu0
    %112 = vst [vmem:[#allocation7] sm:$0xff] %v101
    %113 = vst [vmem:[#allocation7 + $0x8] sm:$0xff] %v104
    %114 = vst [vmem:[#allocation7 + $0x10] sm:$0xff] %v107
    %115 = vst [vmem:[#allocation7 + $0x18] sm:$0xff] %v110
    // Predicated region
    $region14: #{a_call__.2} parent=1 // pred_check
      _
    $region15: #{a_call__.2} parent=1 // pred_check_branch
      %117 = sbr.rel (0) target = $region17
    $region16: #{a_call__.2} parent=1 // pred_region
      %119 = vsyncadd [#allocation8], 0
      %s120 = sshll.u32 [#allocation7], 4
      %s121 = int_to_ptr.vmem [resolvable:$true] %s120
      %s122 = sshll.u32 %s4, 4
      %s123 = int_to_ptr.hbm [resolvable:$true] %s122
      %128 = dma.vmem_to_hbm [thread:$0]  %s121, 512, %s123, [#allocation8], 128, 128, 8
    $region17: #{a_call__.2} parent=1 // pred_fallthru
      _
    // Predicated region
    $region18: #{a_call__.2} parent=1 // pred_check
      _
    $region19: #{a_call__.2} parent=1 // pred_check_branch
      %130 = sbr.rel (0) target = $region21
    $region20: #{a_call__.2} parent=1 // pred_region
      %132 = dma.done [#allocation8], 512
    $region21: #{a_call__.2} parent=1 // pred_fallthru
      _
    %133 = vsyncpa [#allocation8], 1

</llo_original>
